<compile_context>
chip_gen: v7x
topology: tpu7x:2x2x1
jax: 0.10.0
libtpu: 0.0.40
codegen_flags: <defaults>
</compile_context>

<pallas_src>
import math

import jax
import jax.numpy as jnp
from jax.experimental import pallas as pl
from jax.experimental.pallas import tpu as pltpu

LANE = 128
MAX_ROWS_PER_BLOCK = 4096      # 4096 * 128 * 4 B = 2 MiB per stream per block
VMEM_LIMIT = 32 * 1024 * 1024


def _vp_kernel(alpha_ref, sigma_ref, x_ref, e_ref, o_ref):
    """o = alpha[b] * x + sigma[b] * e  (per-batch scalars read from SMEM)."""
    b = pl.program_id(0)
    alpha = alpha_ref[b]
    sigma = sigma_ref[b]
    o_ref[...] = (alpha * x_ref[...].astype(jnp.float32)
                  + sigma * e_ref[...].astype(jnp.float32)).astype(o_ref.dtype)


def make_vp_forward(eps: float = 1e-3):
    acos_sqrt_eps = math.acos(math.sqrt(eps))

    def vp_forward(x, t, key):
        """x: (B, C, H, W), t: (B,), key: jax PRNG key.
        Returns (x_noised, e), both shaped like x."""
        B, C, H, W = x.shape
        L = C * H * W

        # Tiling-invariant, reproducible noise (generated once, reused as-is).
        e = jax.random.normal(key, x.shape, dtype=x.dtype)

        # Per-batch scalars hoisted out of the kernel.
        alpha = jnp.cos(acos_sqrt_eps * t.astype(jnp.float32)) ** 2
        sigma = jnp.sqrt(1.0 - alpha * alpha + eps * eps)

        smem = pl.BlockSpec(memory_space=pltpu.MemorySpace.SMEM)

        if L % LANE == 0:
            # Lane-dense fast path: (B, L) -> (B, R, 128) view (free reshape).
            R = L // LANE
            x3 = x.reshape(B, R, LANE)
            e3 = e.reshape(B, R, LANE)

            if R >= 8:
                tr = min((R // 8) * 8, MAX_ROWS_PER_BLOCK)   # full f32 vregs
            else:
                tr = R                                        # equals full dim
            nj = pl.cdiv(R, tr)
            # Megacore: guarantee >= 2 independent grid blocks when possible.
            if B * nj < 2 and R > 8:
                tr = max(8, (((R + 1) // 2 + 7) // 8) * 8)
                nj = pl.cdiv(R, tr)

            blk = pl.BlockSpec((1, tr, LANE), lambda bb, jj: (bb, jj, 0))
            out3 = pl.pallas_call(
                _vp_kernel,
                out_shape=jax.ShapeDtypeStruct((B, R, LANE), x.dtype),
                grid=(B, nj),
                in_specs=[smem, smem, blk, blk],
                out_specs=blk,
                compiler_params=pltpu.CompilerParams(
                    dimension_semantics=("parallel", "parallel"),
                    vmem_limit_bytes=VMEM_LIMIT,
                ),
            )(alpha, sigma, x3, e3)
            x_noised = out3.reshape(B, C, H, W)
        else:
            # Fallback for non-128-multiple flat length: one batch element per
            # grid step.  Last two block dims equal the full array dims, so no
            # pad / slice HBM copies are needed (lanes are just under-filled).
            blk = pl.BlockSpec((1, C, H, W), lambda bb: (bb, 0, 0, 0))
            x_noised = pl.pallas_call(
                _vp_kernel,
                out_shape=jax.ShapeDtypeStruct((B, C, H, W), x.dtype),
                grid=(B,),
                in_specs=[smem, smem, blk, blk],
                out_specs=blk,
                compiler_params=pltpu.CompilerParams(
                    dimension_semantics=("parallel",),
                    vmem_limit_bytes=VMEM_LIMIT,
                ),
            )(alpha, sigma, x, e)

        return x_noised, e

    return vp_forward


def init_x_imp_params(key, in_c: int, targ_c: int):
    """Deterministic init for the (unused-in-forward) 1x1 conv parameters."""
    kw, kb = jax.random.split(key)
    bound = 1.0 / math.sqrt(in_c)   # PyTorch Conv2d default init bounds
    w = jax.random.uniform(kw, (targ_c, in_c, 1, 1), jnp.float32, -bound, bound)
    b = jax.random.uniform(kb, (targ_c,), jnp.float32, -bound, bound)
    return w, b


if __name__ == "__main__":
    eps = 1e-3
    B, C, H, W = 2, 4, 16, 16
    targ_c = 3

    key = jax.random.PRNGKey(0)
    k_x, k_t, k_e, k_p = jax.random.split(key, 4)

    x = jax.random.normal(k_x, (B, C, H, W), dtype=jnp.float32)
    t = jax.random.uniform(k_t, (B,), dtype=jnp.float32)

    # Constructor-time parameters not used by forward(); init for completeness.
    x_imp_w, x_imp_b = init_x_imp_params(k_p, C, targ_c)

    vp_forward = make_vp_forward(eps)
    x_noised, e = vp_forward(x, t, k_e)
    jax.block_until_ready(x_noised)
    jax.block_until_ready(e)

    # Reference check in plain JAX using the same noise e.
    alpha = jnp.cos(math.acos(math.sqrt(eps)) * t) ** 2
    sigma = jnp.sqrt(1.0 - alpha**2 + eps**2)
    ref = alpha[:, None, None, None] * x + sigma[:, None, None, None] * e

    assert x_noised.shape == (B, C, H, W) and e.shape == (B, C, H, W)
    assert jnp.allclose(x_noised, ref, atol=1e-5, rtol=1e-5)
    # Loose sanity check that the noise is standard normal.
    assert abs(float(jnp.mean(e))) < 0.25
    assert abs(float(jnp.std(e)) - 1.0) < 0.25
    print("KERNEL_OK")
</pallas_src>

<mosaic_0001>
module attributes {stable_mosaic.version = 11 : i64} {
  func.func @_vp_kernel(%arg0: i32, %arg1: i32, %arg2: memref<2xf32, #tpu.memory_space<smem>>, %arg3: memref<2xf32, #tpu.memory_space<smem>>, %arg4: memref<1x8x128xf32, #tpu.memory_space<vmem>>, %arg5: memref<1x8x128xf32, #tpu.memory_space<vmem>>, %arg6: memref<1x8x128xf32, #tpu.memory_space<vmem>>) attributes {dimension_semantics = [#tpu.dimension_semantics<parallel>, #tpu.dimension_semantics<parallel>], iteration_bounds = array<i64: 2, 1>, scalar_prefetch = 0 : i64, scratch_operands = 0 : i64, tpu.core_type = #tpu.core_type<tc>, window_params = [{transform_indices = @transform_0, window_bounds = array<i64: 2>}, {transform_indices = @transform_1, window_bounds = array<i64: 2>}, {transform_indices = @transform_2, window_bounds = array<i64: 1, 8, 128>}, {transform_indices = @transform_3, window_bounds = array<i64: 1, 8, 128>}, {transform_indices = @transform_4, window_bounds = array<i64: 1, 8, 128>}]} {
    %0 = arith.index_cast %arg0 : i32 to index
    %1 = memref.load %arg2[%0] : memref<2xf32, #tpu.memory_space<smem>>
    %2 = arith.index_cast %arg0 : i32 to index
    %3 = memref.load %arg3[%2] : memref<2xf32, #tpu.memory_space<smem>>
    %c0 = arith.constant 0 : index
    %c0_0 = arith.constant 0 : index
    %c0_1 = arith.constant 0 : index
    %4 = vector.load %arg4[%c0, %c0_0, %c0_1] : memref<1x8x128xf32, #tpu.memory_space<vmem>>, vector<1x8x128xf32>
    %5 = vector.broadcast %1 : f32 to vector<1x8x128xf32>
    %6 = arith.mulf %5, %4 : vector<1x8x128xf32>
    %c0_2 = arith.constant 0 : index
    %c0_3 = arith.constant 0 : index
    %c0_4 = arith.constant 0 : index
    %7 = vector.load %arg5[%c0_2, %c0_3, %c0_4] : memref<1x8x128xf32, #tpu.memory_space<vmem>>, vector<1x8x128xf32>
    %8 = vector.broadcast %3 : f32 to vector<1x8x128xf32>
    %9 = arith.mulf %8, %7 : vector<1x8x128xf32>
    %10 = arith.addf %6, %9 : vector<1x8x128xf32>
    %c0_5 = arith.constant 0 : index
    %c0_6 = arith.constant 0 : index
    %c0_7 = arith.constant 0 : index
    %11 = vector.load %arg6[%c0_5, %c0_6, %c0_7] : memref<1x8x128xf32, #tpu.memory_space<vmem>>, vector<1x8x128xf32>
    tpu.vector_store %arg6[%c0_5, %c0_6, %c0_7], %10 {strides = array<i32>} : memref<1x8x128xf32, #tpu.memory_space<vmem>>, vector<1x8x128xf32>,
    return
  }
  func.func @transform_0(%arg0: i32, %arg1: i32) -> i32 {
    %c0_i32 = arith.constant 0 : i32
    %c0_i32_0 = arith.constant 0 : i32
    return %c0_i32 : i32
  }
  func.func @transform_1(%arg0: i32, %arg1: i32) -> i32 {
    %c0_i32 = arith.constant 0 : i32
    %c0_i32_0 = arith.constant 0 : i32
    return %c0_i32 : i32
  }
  func.func @transform_2(%arg0: i32, %arg1: i32) -> (i32, i32, i32) {
    %c0_i32 = arith.constant 0 : i32
    %c0_i32_0 = arith.constant 0 : i32
    return %arg0, %arg1, %c0_i32 : i32, i32, i32
  }
  func.func @transform_3(%arg0: i32, %arg1: i32) -> (i32, i32, i32) {
    %c0_i32 = arith.constant 0 : i32
    %c0_i32_0 = arith.constant 0 : i32
    return %arg0, %arg1, %c0_i32 : i32, i32, i32
  }
  func.func @transform_4(%arg0: i32, %arg1: i32) -> (i32, i32, i32) {
    %c0_i32 = arith.constant 0 : i32
    %c0_i32_0 = arith.constant 0 : i32
    return %arg0, %arg1, %c0_i32 : i32, i32, i32
  }
}

</mosaic_0001>

<llo_original>
// kernel: tpu_custom_call.1
$region0: #{tpu_custom_call.1}
  #allocation0 [shape = 'u32[]', space=smem, size = 0x4, offset = 0x4, fixed_abs, tag = 'smem constant byte address 0x4 - core index']
  #allocation1 [shape = 'u32[144,128]{1,0:T(1,128)}', space=vmem, size = 0x12000, scoped, tag = 'internal scratch']
  %s0 = inlined_call_operand.hbm [shape: f32[2], index: 0, kind: input, shape index: {}]
  %s1 = inlined_call_operand.vmem [shape: f32[2], index: 1, kind: input, shape index: {}]
  %s2 = inlined_call_operand.hbm [shape: f32[2,8,128], index: 2, kind: input, shape index: {}]
  %s3 = inlined_call_operand.hbm [shape: f32[2,8,128], index: 3, kind: input, shape index: {}]
  %s4 = inlined_call_operand.hbm [shape: f32[2,8,128], index: 4, kind: output, shape index: {}]
  %s5 = sld [smem:[#allocation0]]
  $region65: #{tpu_custom_call.1} parent=0
    _
  %s7 = ssub.s32 1, %s5
  %s8 = scalar_select 0, %s7, %s5
  $region1: #{tpu_custom_call.1} parent=0
    #allocation2 [shape = 'u8[512]{0}', space=smem, size = 0x200, scoped, tag = 'input window, operand 0, single buffered']
    #allocation3 [shape = 's32[2]{0}', space=sflag, size = 0x8, scoped, tag = 'scoped memory for tpu_custom_call.1']
    #allocation4 [shape = 's32[2]{0}', space=sflag, size = 0x8, scoped, tag = 'scoped memory for tpu_custom_call.1']
    #allocation5 [shape = 's32[2]{0}', space=sflag, size = 0x8, scoped, tag = 'scoped memory for tpu_custom_call.1']
    #allocation6 [shape = 's32[2]{0}', space=sflag, size = 0x8, scoped, tag = 'scoped memory for tpu_custom_call.1']
    #allocation7 [shape = 'u8[512]{0}', space=smem, size = 0x200, scoped, tag = 'input window, operand 1, single buffered']
    #allocation8 [shape = 'u8[8192]{0}', space=vmem, size = 0x2000, scoped, tag = 'input window, operand 2']
    #allocation9 [shape = 'u8[8192]{0}', space=vmem, size = 0x2000, scoped, tag = 'input window, operand 3']
    #allocation10 [shape = 's32[2]{0}', space=sflag, size = 0x8, scoped, tag = 'scoped memory for tpu_custom_call.1']
    #allocation11 [shape = 'u8[8192]{0}', space=vmem, size = 0x2000, scoped, tag = 'output window, operand 0']
    %9 = vsyncpa [#allocation5], 0
    %10 = vsyncpa [#allocation6], 0
    %11 = vsyncpa [#allocation3], 0
    %s12 = scalar_lea.sflag [#allocation3], 1
    %13 = vsyncpa %s12, 0
    %14 = vsyncpa [#allocation10], 0
    %s15 = scalar_lea.sflag [#allocation10], 1
    %16 = vsyncpa %s15, 0
    %17 = vsyncpa [#allocation4], 0
    %s18 = scalar_lea.sflag [#allocation4], 1
    %19 = vsyncpa %s18, 0
    loop: start=0, step=1, limit=4
    $region2: #{tpu_custom_call.1} parent=1 // loop_pre_header
      _
    $region3: #{tpu_custom_call.1} parent=1 // loop_header
      %s21 = sphi 0, %s25
      %p22 = scmp.ge.s32.totalorder %s21, 4
      %s28 = sphi 0, %s40
      %s29 = sphi 0, %s36
      %s30 = sphi 0, %s28
      %s31 = sphi 0, %s29
      %s32 = sphi 0, %s30
      %s33 = sphi 0, %s31
      %s41 = sphi 0, %s41
      %s43 = sphi 0, %s41
      %s44 = sphi 0, %s43
      %s58 = sphi 0, %s44
      %s62 = sphi 0, %s62
      %s64 = sphi 0, %s62
      %s65 = sphi 0, %s64
      %s79 = sphi 0, %s65
      %s87 = sphi 0, %s89
      %s90 = sphi 0, %s87
      %s91 = sphi 0, %s90
      %s107 = sphi 0, %s91
      %s115 = sphi 0, %s117
      %s118 = sphi 0, %s115
      %s119 = sphi 0, %s118
      %s135 = sphi 0, %s119
      %s143 = sphi 0, %s145
      %s146 = sphi 0, %s143
      %s147 = sphi 0, %s146
      %s163 = sphi 0, %s147
    $region4: #{tpu_custom_call.1} parent=1 // loop_header_branch
      %24 = sbr.rel (%p22) target = $region8
    $region5: #{tpu_custom_call.1} parent=1 // loop_body
      %s26 = ssub.s32 %s21, 1
      %s27 = ssub.s32 %s21, 2
      %s34 = sadd.s32 1, %s29
      %p35 = scmp.ge.s32.totalorder %s34, 1
      %s36 = scalar_select %p35, 0, %s34
      %s37 = sadd.s32 1, %s28
      %s38 = scalar_select %p35, %s37, %s28
      %p39 = scmp.ge.s32.totalorder %s38, 2
      %s40 = scalar_select %p39, 0, %s38
      %s42 = sadd.s32 %s41, 1
      %p45 = scmp.eq.s32.totalorder %s21, 1
      %p46 = scmp.ne.s32.totalorder %s41, %s43
      %p47 = scmp.eq.s32.totalorder %s21, 0
      %p48 = por %p46, %p47
      %p49 = scmp.ne.s32.totalorder %s41, %s43
      %p50 = scmp.eq.s32.totalorder %s26, 1
      %p51 = por %p49, %p50
      %p52 = scmp.ne.s32.totalorder %s43, %s44
      %p53 = scmp.eq.s32.totalorder %s26, 0
      %p54 = por %p52, %p53
      %p55 = scmp.ne.s32.totalorder %s43, %s44
      %p56 = scmp.eq.s32.totalorder %s27, 1
      %p57 = por %p55, %p56
      %p59 = scmp.ne.s32.totalorder %s44, %s58
      %p60 = scmp.eq.s32.totalorder %s27, 0
      %p61 = por %p59, %p60
      %s63 = sadd.s32 %s62, 1
      %p66 = scmp.eq.s32.totalorder %s21, 1
      %p67 = scmp.ne.s32.totalorder %s62, %s64
      %p68 = scmp.eq.s32.totalorder %s21, 0
      %p69 = por %p67, %p68
      %p70 = scmp.ne.s32.totalorder %s62, %s64
      %p71 = scmp.eq.s32.totalorder %s26, 1
      %p72 = por %p70, %p71
      %p73 = scmp.ne.s32.totalorder %s64, %s65
      %p74 = scmp.eq.s32.totalorder %s26, 0
      %p75 = por %p73, %p74
      %p76 = scmp.ne.s32.totalorder %s64, %s65
      %p77 = scmp.eq.s32.totalorder %s27, 1
      %p78 = por %p76, %p77
      %p80 = scmp.ne.s32.totalorder %s65, %s79
      %p81 = scmp.eq.s32.totalorder %s27, 0
      %p82 = por %p80, %p81
      %s83 = ssub.s32 %s28, %s40
      %s84 = ssub.s32 %s29, %s36
      %s85 = sor.u32 %s83, %s84
      %p86 = scmp.eq.s32.totalorder %s85, 0
      %s88 = sadd.s32 %s87, 1
      %s89 = scalar_select %p86, %s87, %s88
      %p92 = pneg %p86
      %p93 = scmp.eq.s32.totalorder %s21, 1
      %p94 = por %p92, %p93
      %p95 = scmp.ne.s32.totalorder %s87, %s90
      %p96 = scmp.eq.s32.totalorder %s21, 0
      %p97 = por %p95, %p96
      %p98 = scmp.ne.s32.totalorder %s87, %s90
      %p99 = scmp.eq.s32.totalorder %s26, 1
      %p100 = por %p98, %p99
      %p101 = scmp.ne.s32.totalorder %s90, %s91
      %p102 = scmp.eq.s32.totalorder %s26, 0
      %p103 = por %p101, %p102
      %p104 = scmp.ne.s32.totalorder %s90, %s91
      %p105 = scmp.eq.s32.totalorder %s27, 1
      %p106 = por %p104, %p105
      %p108 = scmp.ne.s32.totalorder %s91, %s107
      %p109 = scmp.eq.s32.totalorder %s27, 0
      %p110 = por %p108, %p109
      %s111 = ssub.s32 %s28, %s40
      %s112 = ssub.s32 %s29, %s36
      %s113 = sor.u32 %s111, %s112
      %p114 = scmp.eq.s32.totalorder %s113, 0
      %s116 = sadd.s32 %s115, 1
      %s117 = scalar_select %p114, %s115, %s116
      %p120 = pneg %p114
      %p121 = scmp.eq.s32.totalorder %s21, 1
      %p122 = por %p120, %p121
      %p123 = scmp.ne.s32.totalorder %s115, %s118
      %p124 = scmp.eq.s32.totalorder %s21, 0
      %p125 = por %p123, %p124
      %p126 = scmp.ne.s32.totalorder %s115, %s118
      %p127 = scmp.eq.s32.totalorder %s26, 1
      %p128 = por %p126, %p127
      %p129 = scmp.ne.s32.totalorder %s118, %s119
      %p130 = scmp.eq.s32.totalorder %s26, 0
      %p131 = por %p129, %p130
      %p132 = scmp.ne.s32.totalorder %s118, %s119
      %p133 = scmp.eq.s32.totalorder %s27, 1
      %p134 = por %p132, %p133
      %p136 = scmp.ne.s32.totalorder %s119, %s135
      %p137 = scmp.eq.s32.totalorder %s27, 0
      %p138 = por %p136, %p137
      %s139 = ssub.s32 %s28, %s40
      %s140 = ssub.s32 %s29, %s36
      %s141 = sor.u32 %s139, %s140
      %p142 = scmp.eq.s32.totalorder %s141, 0
      %s144 = sadd.s32 %s143, 1
      %s145 = scalar_select %p142, %s143, %s144
      %p148 = pneg %p142
      %p149 = scmp.eq.s32.totalorder %s21, 1
      %p150 = por %p148, %p149
      %p151 = scmp.ne.s32.totalorder %s143, %s146
      %p152 = scmp.eq.s32.totalorder %s21, 0
      %p153 = por %p151, %p152
      %p154 = scmp.ne.s32.totalorder %s143, %s146
      %p155 = scmp.eq.s32.totalorder %s26, 1
      %p156 = por %p154, %p155
      %p157 = scmp.ne.s32.totalorder %s146, %s147
      %p158 = scmp.eq.s32.totalorder %s26, 0
      %p159 = por %p157, %p158
      %p160 = scmp.ne.s32.totalorder %s146, %s147
      %p161 = scmp.eq.s32.totalorder %s27, 1
      %p162 = por %p160, %p161
      %p164 = scmp.ne.s32.totalorder %s147, %s163
      %p165 = scmp.eq.s32.totalorder %s27, 0
      %p166 = por %p164, %p165
      %p167 = scmp.le.s32.totalorder 1, %s21
      %p168 = scmp.lt.s32.totalorder %s21, 3
      %p169 = pnand %p167, %p168
      %p170 = pneg %p169
      // Predicated region
      $region9: #{tpu_custom_call.1} parent=5 // pred_check
        _
      $region10: #{tpu_custom_call.1} parent=5 // pred_check_branch
        %172 = sbr.rel (%p169) target = $region12
      $region11: #{tpu_custom_call.1} parent=5 // pred_region
        %s173 = ssub.s32 %s21, 1
        // Predicated region
        $region13: #{tpu_custom_call.1} parent=11 // pred_check
          %p174 = pneg %p54
        $region14: #{tpu_custom_call.1} parent=11 // pred_check_branch
          %176 = sbr.rel (%p174) target = $region16
        $region15: #{tpu_custom_call.1} parent=11 // pred_region
          %s178 = ssub.s32 16, 16
          %179 = vsyncadd [#allocation5], %s178
          %182 = dma.hbm_to_smem %s0, 16, [#allocation2], [#allocation5]
        $region16: #{tpu_custom_call.1} parent=11 // pred_fallthru
          _
        // Predicated region
        $region17: #{tpu_custom_call.1} parent=11 // pred_check
          %p183 = pneg %p75
        $region18: #{tpu_custom_call.1} parent=11 // pred_check_branch
          %185 = sbr.rel (%p183) target = $region20
        $region19: #{tpu_custom_call.1} parent=11 // pred_region
          %s187 = ssub.s32 16, 16
          %188 = vsyncadd [#allocation6], %s187
          %s190 = sshll.u32 %s1, 4
          %s191 = int_to_ptr.vmem [resolvable:$true] %s190
          %193 = dma.vmem_to_smem %s191, 16, [#allocation7], [#allocation6]
        $region20: #{tpu_custom_call.1} parent=11 // pred_fallthru
          _
      $region12: #{tpu_custom_call.1} parent=5 // pred_fallthru
        _
      %p194 = scmp.lt.s32.totalorder %s21, 2
      // Predicated region
      $region21: #{tpu_custom_call.1} parent=5 // pred_check
        %p195 = pneg %p194
      $region22: #{tpu_custom_call.1} parent=5 // pred_check_branch
        %197 = sbr.rel (%p195) target = $region24
      $region23: #{tpu_custom_call.1} parent=5 // pred_region
        // Predicated region
        $region25: #{tpu_custom_call.1} parent=23 // pred_check
          %p198 = pneg %p97
        $region26: #{tpu_custom_call.1} parent=23 // pred_check_branch
          %200 = sbr.rel (%p198) target = $region28
        $region27: #{tpu_custom_call.1} parent=23 // pred_region
          %s201 = sand.u32 %s87, 1
          %s202 = scalar_lea.sflag [#allocation3], %s201
          %s203 = sand.u32 %s87, 1
          %s204 = smul.addr %s203, 8
          %s205 = scalar_lea.vmem [#allocation8], %s204
          %s207 = ssub.s32 128, 128
          %208 = vsyncadd %s202, %s207
          %s209 = sadd.s32 %s29, %s28
          %s210 = smul.addr %s209, 128
          %s211 = scalar_lea.hbm %s2, %s210
          %s213 = sshll.u32 %s205, 4
          %s214 = int_to_ptr.vmem [resolvable:$true] %s213
          %216 = dma.hbm_to_vmem [thread:$0]  %s211, 128, %s214, %s202
        $region28: #{tpu_custom_call.1} parent=23 // pred_fallthru
          _
        // Predicated region
        $region29: #{tpu_custom_call.1} parent=23 // pred_check
          %p217 = pneg %p125
        $region30: #{tpu_custom_call.1} parent=23 // pred_check_branch
          %219 = sbr.rel (%p217) target = $region32
        $region31: #{tpu_custom_call.1} parent=23 // pred_region
          %s220 = sand.u32 %s115, 1
          %s221 = scalar_lea.sflag [#allocation10], %s220
          %s222 = sand.u32 %s115, 1
          %s223 = smul.addr %s222, 8
          %s224 = scalar_lea.vmem [#allocation9], %s223
          %s226 = ssub.s32 128, 128
          %227 = vsyncadd %s221, %s226
          %s228 = sadd.s32 %s29, %s28
          %s229 = smul.addr %s228, 128
          %s230 = scalar_lea.hbm %s3, %s229
          %s232 = sshll.u32 %s224, 4
          %s233 = int_to_ptr.vmem [resolvable:$true] %s232
          %235 = dma.hbm_to_vmem [thread:$0]  %s230, 128, %s233, %s221
        $region32: #{tpu_custom_call.1} parent=23 // pred_fallthru
          _
      $region24: #{tpu_custom_call.1} parent=5 // pred_fallthru
        _
      %p236 = scmp.le.s32.totalorder 1, %s21
      %p237 = scmp.lt.s32.totalorder %s21, 3
      %p238 = pnand %p236, %p237
      %p239 = pneg %p238
      // Predicated region
      $region33: #{tpu_custom_call.1} parent=5 // pred_check
        _
      $region34: #{tpu_custom_call.1} parent=5 // pred_check_branch
        %241 = sbr.rel (%p238) target = $region36
      $region35: #{tpu_custom_call.1} parent=5 // pred_region
        %s242 = ssub.s32 %s21, 1
        // Predicated region
        $region37: #{tpu_custom_call.1} parent=35 // pred_check
          %p243 = pneg %p54
        $region38: #{tpu_custom_call.1} parent=35 // pred_check_branch
          %245 = sbr.rel (%p243) target = $region40
        $region39: #{tpu_custom_call.1} parent=35 // pred_region
          %246 = dma.done [#allocation5], 16
        $region40: #{tpu_custom_call.1} parent=35 // pred_fallthru
          _
        // Predicated region
        $region41: #{tpu_custom_call.1} parent=35 // pred_check
          %p247 = pneg %p75
        $region42: #{tpu_custom_call.1} parent=35 // pred_check_branch
          %249 = sbr.rel (%p247) target = $region44
        $region43: #{tpu_custom_call.1} parent=35 // pred_region
          %250 = dma.done [#allocation6], 16
        $region44: #{tpu_custom_call.1} parent=35 // pred_fallthru
          _
        %s251 = sand.u32 %s90, 1
        %s252 = scalar_lea.sflag [#allocation3], %s251
        %s253 = sand.u32 %s90, 1
        %s254 = smul.addr %s253, 8
        %s255 = scalar_lea.vmem [#allocation8], %s254
        // Predicated region
        $region45: #{tpu_custom_call.1} parent=35 // pred_check
          %p256 = pneg %p103
        $region46: #{tpu_custom_call.1} parent=35 // pred_check_branch
          %258 = sbr.rel (%p256) target = $region48
        $region47: #{tpu_custom_call.1} parent=35 // pred_region
          %259 = dma.done %s252, 128
        $region48: #{tpu_custom_call.1} parent=35 // pred_fallthru
          _
        %s260 = sand.u32 %s118, 1
        %s261 = scalar_lea.sflag [#allocation10], %s260
        %s262 = sand.u32 %s118, 1
        %s263 = smul.addr %s262, 8
        %s264 = scalar_lea.vmem [#allocation9], %s263
        // Predicated region
        $region49: #{tpu_custom_call.1} parent=35 // pred_check
          %p265 = pneg %p131
        $region50: #{tpu_custom_call.1} parent=35 // pred_check_branch
          %267 = sbr.rel (%p265) target = $region52
        $region51: #{tpu_custom_call.1} parent=35 // pred_region
          %268 = dma.done %s261, 128
        $region52: #{tpu_custom_call.1} parent=35 // pred_fallthru
          _
        %269 = sfence
        %p270 = pneg %p54
        %p271 = pneg %p51
        %p272 = pneg %p75
        %p273 = pneg %p72
        %s274 = sand.u32 %s90, 1
        %s275 = scalar_lea.sflag [#allocation3], %s274
        %s276 = sand.u32 %s90, 1
        %s277 = smul.addr %s276, 8
        %s278 = scalar_lea.vmem [#allocation8], %s277
        %p279 = pneg %p103
        %p280 = pneg %p100
        %s281 = sand.u32 %s118, 1
        %s282 = scalar_lea.sflag [#allocation10], %s281
        %s283 = sand.u32 %s118, 1
        %s284 = smul.addr %s283, 8
        %s285 = scalar_lea.vmem [#allocation9], %s284
        %p286 = pneg %p131
        %p287 = pneg %p128
        %p288 = pneg %p159
        %p289 = pneg %p156
        %s290 = sand.u32 %s146, 1
        %s291 = scalar_lea.sflag [#allocation4], %s290
        %s292 = sand.u32 %s146, 1
        %s293 = smul.addr %s292, 8
        %s294 = scalar_lea.vmem [#allocation11], %s293
        %s295 = sld [smem:[#allocation2 + %s30]]
        %s296 = sld [smem:[#allocation7 + %s30]]
        %v297 = vld [vmem:[%s255] sm:$0xff]
        %v298 = vstv %s295
        %v299 = vmul.f32 %v298, %v297
        %v300 = vld [vmem:[%s264] sm:$0xff]
        %v301 = vstv %s296
        %v302 = vmul.f32 %v301, %v300
        %v303 = vadd.f32 %v299, %v302
        %304 = vst [vmem:[%s294] sm:$0xff] %v303
        %s305 = sand.u32 %s146, 1
        %s306 = scalar_lea.sflag [#allocation4], %s305
        %s307 = sand.u32 %s146, 1
        %s308 = smul.addr %s307, 8
        %s309 = scalar_lea.vmem [#allocation11], %s308
        // Predicated region
        $region53: #{tpu_custom_call.1} parent=35 // pred_check
          %p310 = pneg %p156
        $region54: #{tpu_custom_call.1} parent=35 // pred_check_branch
          %312 = sbr.rel (%p310) target = $region56
        $region55: #{tpu_custom_call.1} parent=35 // pred_region
          %s314 = ssub.s32 128, 128
          %315 = vsyncadd %s306, %s314
          %s316 = sadd.s32 %s31, %s30
          %s317 = smul.addr %s316, 128
          %s318 = scalar_lea.hbm %s4, %s317
          %s320 = sshll.u32 %s309, 4
          %s321 = int_to_ptr.vmem [resolvable:$true] %s320
          %323 = dma.vmem_to_hbm [thread:$0]  %s321, 128, %s318, %s306
        $region56: #{tpu_custom_call.1} parent=35 // pred_fallthru
          _
      $region36: #{tpu_custom_call.1} parent=5 // pred_fallthru
        _
      %p324 = scmp.le.s32.totalorder 2, %s21
      // Predicated region
      $region57: #{tpu_custom_call.1} parent=5 // pred_check
        %p325 = pneg %p324
      $region58: #{tpu_custom_call.1} parent=5 // pred_check_branch
        %327 = sbr.rel (%p325) target = $region60
      $region59: #{tpu_custom_call.1} parent=5 // pred_region
        %s328 = ssub.s32 %s21, 2
        // Predicated region
        $region61: #{tpu_custom_call.1} parent=59 // pred_check
          %p329 = pneg %p162
        $region62: #{tpu_custom_call.1} parent=59 // pred_check_branch
          %331 = sbr.rel (%p329) target = $region64
        $region63: #{tpu_custom_call.1} parent=59 // pred_region
          %s332 = sand.u32 %s147, 1
          %s333 = scalar_lea.sflag [#allocation4], %s332
          %s334 = sand.u32 %s147, 1
          %s335 = smul.addr %s334, 8
          %s336 = scalar_lea.vmem [#allocation11], %s335
          %337 = dma.done %s333, 128
        $region64: #{tpu_custom_call.1} parent=59 // pred_fallthru
          _
      $region60: #{tpu_custom_call.1} parent=5 // pred_fallthru
        _
    $region6: #{tpu_custom_call.1} parent=1 // loop_footer
      %s25 = sadd.s32 1, %s21
    $region7: #{tpu_custom_call.1} parent=1 // loop_footer_branch
      %20 = sbr.rel target = $region3
    $region8: #{tpu_custom_call.1} parent=1 // loop_exit
      _
    %338 = vsyncpa [#allocation3], 1
    %s339 = scalar_lea.sflag [#allocation3], 1
    %340 = vsyncpa %s339, 1
    %341 = vsyncpa [#allocation10], 1
    %s342 = scalar_lea.sflag [#allocation10], 1
    %343 = vsyncpa %s342, 1
    %344 = vsyncpa [#allocation4], 1
    %s345 = scalar_lea.sflag [#allocation4], 1
    %346 = vsyncpa %s345, 1
    %347 = vsyncpa [#allocation5], 1
    %s348 = scalar_lea.sflag [#allocation5], 1
    %349 = vsyncpa %s348, 1
    %350 = vsyncpa [#allocation6], 1
    %s351 = scalar_lea.sflag [#allocation6], 1
    %352 = vsyncpa %s351, 1

</llo_original>
